<compile_context>
chip_gen: v6e
topology: v6e:2x2x1
jax: 0.10.0
libtpu: 0.0.40
codegen_flags: <defaults>
</compile_context>

<pallas_src>
import jax
import jax.numpy as jnp
from jax.experimental import pallas as pl
from jax.experimental.pallas import tpu as pltpu

EPS = 1e-5  # module default


def layernorm_kernel(x_ref, gb_ref, o_ref):
    x = x_ref[...]                                   # (Bt, C, HWp) f32
    g = gb_ref[0]                                    # (C, 1)
    b = gb_ref[1]                                    # (C, 1)

    mean = jnp.mean(x, axis=1, keepdims=True)        # (Bt, 1, HWp)
    var = jnp.mean((x - mean) ** 2, axis=1, keepdims=True)   # unbiased=False
    std = jnp.sqrt(var)
    inv = 1.0 / (std + EPS)                          # eps added to std (PyTorch code)

    o_ref[...] = ((x - mean) * inv * g + b).astype(o_ref.dtype)


def layernorm_nchw(x, g, b, eps=EPS):
    """x: (B, C, H, W) float32; g, b: (1, C, 1, 1)."""
    B, C, H, W = x.shape
    HW = H * W
    HWp = ((HW + 127) // 128) * 128                  # lane-dense last dim
    x2 = x.reshape(B, C, HW)
    if HWp != HW:
        x2 = jnp.pad(x2, ((0, 0), (0, 0), (0, HWp - HW)))

    # Pack gamma/beta into a single tiny VMEM input: (2, C, 1).
    gb = jnp.stack([g.reshape(C, 1), b.reshape(C, 1)], axis=0).astype(jnp.float32)

    # At most 2 grid steps: 2-way "parallel" batch split feeds both v7x cores;
    # on single-TC chips (v5e/v6e) the extra sequential step is negligible.
    nblk = 2 if (B >= 2 and B % 2 == 0) else 1
    Bt = B // nblk

    out = pl.pallas_call(
        layernorm_kernel,
        out_shape=jax.ShapeDtypeStruct((B, C, HWp), x.dtype),
        grid=(nblk,),
        in_specs=[
            pl.BlockSpec((Bt, C, HWp), lambda i: (i, 0, 0)),   # x slab
            pl.BlockSpec((2, C, 1), lambda i: (0, 0, 0)),      # packed gamma/beta
        ],
        out_specs=pl.BlockSpec((Bt, C, HWp), lambda i: (i, 0, 0)),
        compiler_params=pltpu.CompilerParams(
            dimension_semantics=("parallel",)),
    )(x2, gb)

    if HWp != HW:
        out = out[:, :, :HW]
    return out.reshape(B, C, H, W)


def ref_forward(x, g, b, eps=EPS):
    """Plain-JAX reference replicating the PyTorch forward exactly."""
    mean = jnp.mean(x, axis=1, keepdims=True)
    var = jnp.mean((x - mean) ** 2, axis=1, keepdims=True)     # unbiased=False
    std = jnp.sqrt(var)
    return (x - mean) / (std + eps) * g + b


if __name__ == "__main__":
    B, C, H, W = 2, 4, 16, 16

    key = jax.random.PRNGKey(0)
    kx, kg, kb = jax.random.split(key, 3)
    x = jax.random.normal(kx, (B, C, H, W), jnp.float32)
    # Module initializes g=ones, b=zeros; perturb them so the affine path is tested.
    g = 1.0 + 0.1 * jax.random.normal(kg, (1, C, 1, 1), jnp.float32)
    b = 0.1 * jax.random.normal(kb, (1, C, 1, 1), jnp.float32)

    out = layernorm_nchw(x, g, b)
    jax.block_until_ready(out)

    expected = ref_forward(x, g, b)
    assert out.shape == (B, C, H, W)
    assert jnp.allclose(out, expected, rtol=1e-4, atol=1e-4), "mismatch vs reference"

    print("KERNEL_OK")
</pallas_src>

<mosaic_0001>
module attributes {stable_mosaic.version = 11 : i64} {
  func.func @layernorm_kernel(%arg0: i32, %arg1: memref<1x4x256xf32, #tpu.memory_space<vmem>>, %arg2: memref<2x4x1xf32, #tpu.memory_space<vmem>>, %arg3: memref<1x4x256xf32, #tpu.memory_space<vmem>>) attributes {dimension_semantics = [#tpu.dimension_semantics<parallel>], iteration_bounds = array<i64: 2>, scalar_prefetch = 0 : i64, scratch_operands = 0 : i64, tpu.core_type = #tpu.core_type<tc>, window_params = [{transform_indices = @transform_0, window_bounds = array<i64: 1, 4, 256>}, {pipeline_mode = #tpu.pipeline_mode<synchronous>, transform_indices = @transform_1, window_bounds = array<i64: 2, 4, 1>}, {transform_indices = @transform_2, window_bounds = array<i64: 1, 4, 256>}]} {
    %c0 = arith.constant 0 : index
    %c0_0 = arith.constant 0 : index
    %c0_1 = arith.constant 0 : index
    %0 = vector.load %arg1[%c0, %c0_0, %c0_1] : memref<1x4x256xf32, #tpu.memory_space<vmem>>, vector<1x4x256xf32>
    %c0_2 = arith.constant 0 : index
    %c0_3 = arith.constant 0 : index
    %c0_4 = arith.constant 0 : index
    %1 = vector.load %arg2[%c0_2, %c0_3, %c0_4] : memref<2x4x1xf32, #tpu.memory_space<vmem>>, vector<1x4x1xf32>
    %2 = vector.shape_cast %1 : vector<1x4x1xf32> to vector<4x1xf32>
    %c1 = arith.constant 1 : index
    %c0_5 = arith.constant 0 : index
    %c0_6 = arith.constant 0 : index
    %3 = vector.load %arg2[%c1, %c0_5, %c0_6] : memref<2x4x1xf32, #tpu.memory_space<vmem>>, vector<1x4x1xf32>
    %4 = vector.shape_cast %3 : vector<1x4x1xf32> to vector<4x1xf32>
    %cst = arith.constant dense<0.000000e+00> : vector<1x256xf32>
    %5 = vector.multi_reduction <add>, %0, %cst [1] : vector<1x4x256xf32> to vector<1x256xf32>
    %6 = vector.shape_cast %5 : vector<1x256xf32> to vector<1x1x256xf32>
    %cst_7 = arith.constant 4.000000e+00 : f32
    %7 = vector.broadcast %cst_7 : f32 to vector<1x1x256xf32>
    %8 = arith.divf %6, %7 : vector<1x1x256xf32>
    %9 = vector.broadcast %8 : vector<1x1x256xf32> to vector<1x4x256xf32>
    %10 = arith.subf %0, %9 : vector<1x4x256xf32>
    %11 = arith.mulf %10, %10 : vector<1x4x256xf32>
    %cst_8 = arith.constant dense<0.000000e+00> : vector<1x256xf32>
    %12 = vector.multi_reduction <add>, %11, %cst_8 [1] : vector<1x4x256xf32> to vector<1x256xf32>
    %13 = vector.shape_cast %12 : vector<1x256xf32> to vector<1x1x256xf32>
    %cst_9 = arith.constant 4.000000e+00 : f32
    %14 = vector.broadcast %cst_9 : f32 to vector<1x1x256xf32>
    %15 = arith.divf %13, %14 : vector<1x1x256xf32>
    %16 = math.sqrt %15 : vector<1x1x256xf32>
    %cst_10 = arith.constant 9.99999974E-6 : f32
    %17 = vector.broadcast %cst_10 : f32 to vector<1x1x256xf32>
    %18 = arith.addf %16, %17 : vector<1x1x256xf32>
    %cst_11 = arith.constant 1.000000e+00 : f32
    %19 = vector.broadcast %cst_11 : f32 to vector<1x1x256xf32>
    %20 = arith.divf %19, %18 : vector<1x1x256xf32>
    %21 = vector.broadcast %8 : vector<1x1x256xf32> to vector<1x4x256xf32>
    %22 = arith.subf %0, %21 : vector<1x4x256xf32>
    %23 = vector.broadcast %20 : vector<1x1x256xf32> to vector<1x4x256xf32>
    %24 = arith.mulf %22, %23 : vector<1x4x256xf32>
    %25 = vector.shape_cast %2 : vector<4x1xf32> to vector<1x4x1xf32>
    %26 = vector.broadcast %25 : vector<1x4x1xf32> to vector<1x4x256xf32>
    %27 = arith.mulf %24, %26 : vector<1x4x256xf32>
    %28 = vector.shape_cast %4 : vector<4x1xf32> to vector<1x4x1xf32>
    %29 = vector.broadcast %28 : vector<1x4x1xf32> to vector<1x4x256xf32>
    %30 = arith.addf %27, %29 : vector<1x4x256xf32>
    %c0_12 = arith.constant 0 : index
    %c0_13 = arith.constant 0 : index
    %c0_14 = arith.constant 0 : index
    %31 = vector.load %arg3[%c0_12, %c0_13, %c0_14] : memref<1x4x256xf32, #tpu.memory_space<vmem>>, vector<1x4x256xf32>
    tpu.vector_store %arg3[%c0_12, %c0_13, %c0_14], %30 {strides = array<i32>} : memref<1x4x256xf32, #tpu.memory_space<vmem>>, vector<1x4x256xf32>,
    return
  }
  func.func @transform_0(%arg0: i32) -> (i32, i32, i32) {
    %c0_i32 = arith.constant 0 : i32
    %c0_i32_0 = arith.constant 0 : i32
    %c0_i32_1 = arith.constant 0 : i32
    return %arg0, %c0_i32, %c0_i32_0 : i32, i32, i32
  }
  func.func @transform_1(%arg0: i32) -> (i32, i32, i32) {
    %c0_i32 = arith.constant 0 : i32
    %c0_i32_0 = arith.constant 0 : i32
    %c0_i32_1 = arith.constant 0 : i32
    %c0_i32_2 = arith.constant 0 : i32
    return %c0_i32, %c0_i32_0, %c0_i32_1 : i32, i32, i32
  }
  func.func @transform_2(%arg0: i32) -> (i32, i32, i32) {
    %c0_i32 = arith.constant 0 : i32
    %c0_i32_0 = arith.constant 0 : i32
    %c0_i32_1 = arith.constant 0 : i32
    return %arg0, %c0_i32, %c0_i32_0 : i32, i32, i32
  }
}

</mosaic_0001>

<llo_original>
// kernel: tpu_custom_call.1
$region0: #{tpu_custom_call.1}
  #allocation0 [shape = 'u32[]', space=smem, size = 0x4, offset = 0x4, fixed_abs, tag = 'smem constant byte address 0x4 - core index']
  #allocation1 [shape = 'u32[144,128]{1,0:T(1,128)}', space=vmem, size = 0x12000, scoped, tag = 'internal scratch']
  %s0 = inlined_call_operand.hbm [shape: f32[2,4,256], index: 0, kind: input, shape index: {}]
  %s1 = inlined_call_operand.vmem [shape: f32[2,4,1], index: 1, kind: input, shape index: {}]
  %s2 = inlined_call_operand.hbm [shape: f32[2,4,256], index: 2, kind: output, shape index: {}]
  %s3 = sld [smem:[#allocation0]]
  $region45: #{tpu_custom_call.1} parent=0
    _
  %s5 = ssub.s32 1, %s3
  %s6 = scalar_select 0, %s5, %s3
  $region1: #{tpu_custom_call.1} parent=0
    #allocation2 [shape = 'u8[8192]{0}', space=vmem, size = 0x2000, scoped, tag = 'input window, operand 0']
    #allocation3 [shape = 's32[2]{0}', space=sflag, size = 0x8, scoped, tag = 'scoped memory for tpu_custom_call.1']
    #allocation4 [shape = 's32[2]{0}', space=sflag, size = 0x8, scoped, tag = 'scoped memory for tpu_custom_call.1']
    #allocation5 [shape = 'u8[8192]{0}', space=vmem, size = 0x2000, scoped, tag = 'output window, operand 0']
    %7 = vsyncpa [#allocation3], 0
    %s8 = scalar_lea.sflag [#allocation3], 1
    %9 = vsyncpa %s8, 0
    %10 = vsyncpa [#allocation4], 0
    %s11 = scalar_lea.sflag [#allocation4], 1
    %12 = vsyncpa %s11, 0
    loop: start=0, step=1, limit=4
    $region2: #{tpu_custom_call.1} parent=1 // loop_pre_header
      _
    $region3: #{tpu_custom_call.1} parent=1 // loop_header
      %s14 = sphi 0, %s18
      %p15 = scmp.ge.s32.totalorder %s14, 4
      %s24 = sphi 0, %s26
      %s27 = sphi 0, %s24
      %s28 = sphi 0, %s27
      %s44 = sphi 0, %s28
      %s48 = sphi 0, %s48
      %s50 = sphi 0, %s48
      %s51 = sphi 0, %s50
      %s65 = sphi 0, %s51
      %s71 = sphi 0, %s73
      %s74 = sphi 0, %s71
      %s75 = sphi 0, %s74
      %s91 = sphi 0, %s75
    $region4: #{tpu_custom_call.1} parent=1 // loop_header_branch
      %17 = sbr.rel (%p15) target = $region8
    $region5: #{tpu_custom_call.1} parent=1 // loop_body
      %s19 = ssub.s32 %s14, 1
      %s20 = ssub.s32 %s14, 2
      %s21 = sadd.s32 %s14, 1
      %s22 = ssub.s32 %s14, %s21
      %p23 = scmp.eq.s32.totalorder %s22, 0
      %s25 = sadd.s32 %s24, 1
      %s26 = scalar_select %p23, %s24, %s25
      %p29 = pneg %p23
      %p30 = scmp.eq.s32.totalorder %s14, 1
      %p31 = por %p29, %p30
      %p32 = scmp.ne.s32.totalorder %s24, %s27
      %p33 = scmp.eq.s32.totalorder %s14, 0
      %p34 = por %p32, %p33
      %p35 = scmp.ne.s32.totalorder %s24, %s27
      %p36 = scmp.eq.s32.totalorder %s19, 1
      %p37 = por %p35, %p36
      %p38 = scmp.ne.s32.totalorder %s27, %s28
      %p39 = scmp.eq.s32.totalorder %s19, 0
      %p40 = por %p38, %p39
      %p41 = scmp.ne.s32.totalorder %s27, %s28
      %p42 = scmp.eq.s32.totalorder %s20, 1
      %p43 = por %p41, %p42
      %p45 = scmp.ne.s32.totalorder %s28, %s44
      %p46 = scmp.eq.s32.totalorder %s20, 0
      %p47 = por %p45, %p46
      %s49 = sadd.s32 %s48, 1
      %p52 = scmp.eq.s32.totalorder %s14, 1
      %p53 = scmp.ne.s32.totalorder %s48, %s50
      %p54 = scmp.eq.s32.totalorder %s14, 0
      %p55 = por %p53, %p54
      %p56 = scmp.ne.s32.totalorder %s48, %s50
      %p57 = scmp.eq.s32.totalorder %s19, 1
      %p58 = por %p56, %p57
      %p59 = scmp.ne.s32.totalorder %s50, %s51
      %p60 = scmp.eq.s32.totalorder %s19, 0
      %p61 = por %p59, %p60
      %p62 = scmp.ne.s32.totalorder %s50, %s51
      %p63 = scmp.eq.s32.totalorder %s20, 1
      %p64 = por %p62, %p63
      %p66 = scmp.ne.s32.totalorder %s51, %s65
      %p67 = scmp.eq.s32.totalorder %s20, 0
      %p68 = por %p66, %p67
      %s69 = ssub.s32 %s14, %s21
      %p70 = scmp.eq.s32.totalorder %s69, 0
      %s72 = sadd.s32 %s71, 1
      %s73 = scalar_select %p70, %s71, %s72
      %p76 = pneg %p70
      %p77 = scmp.eq.s32.totalorder %s14, 1
      %p78 = por %p76, %p77
      %p79 = scmp.ne.s32.totalorder %s71, %s74
      %p80 = scmp.eq.s32.totalorder %s14, 0
      %p81 = por %p79, %p80
      %p82 = scmp.ne.s32.totalorder %s71, %s74
      %p83 = scmp.eq.s32.totalorder %s19, 1
      %p84 = por %p82, %p83
      %p85 = scmp.ne.s32.totalorder %s74, %s75
      %p86 = scmp.eq.s32.totalorder %s19, 0
      %p87 = por %p85, %p86
      %p88 = scmp.ne.s32.totalorder %s74, %s75
      %p89 = scmp.eq.s32.totalorder %s20, 1
      %p90 = por %p88, %p89
      %p92 = scmp.ne.s32.totalorder %s75, %s91
      %p93 = scmp.eq.s32.totalorder %s20, 0
      %p94 = por %p92, %p93
      %p95 = scmp.le.s32.totalorder 1, %s14
      %p96 = scmp.lt.s32.totalorder %s14, 3
      %p97 = pnand %p95, %p96
      %p98 = pneg %p97
      // Predicated region
      $region9: #{tpu_custom_call.1} parent=5 // pred_check
        _
      $region10: #{tpu_custom_call.1} parent=5 // pred_check_branch
        %100 = sbr.rel (%p97) target = $region12
      $region11: #{tpu_custom_call.1} parent=5 // pred_region
        %s101 = ssub.s32 %s14, 1
        // Predicated region
        $region13: #{tpu_custom_call.1} parent=11 // pred_check
          %p102 = pneg %p61
        $region14: #{tpu_custom_call.1} parent=11 // pred_check_branch
          %104 = sbr.rel (%p102) target = $region16
        $region15: #{tpu_custom_call.1} parent=11 // pred_region
          _
        $region16: #{tpu_custom_call.1} parent=11 // pred_fallthru
          _
      $region12: #{tpu_custom_call.1} parent=5 // pred_fallthru
        _
      %p105 = scmp.lt.s32.totalorder %s14, 2
      // Predicated region
      $region17: #{tpu_custom_call.1} parent=5 // pred_check
        %p106 = pneg %p105
      $region18: #{tpu_custom_call.1} parent=5 // pred_check_branch
        %108 = sbr.rel (%p106) target = $region20
      $region19: #{tpu_custom_call.1} parent=5 // pred_region
        // Predicated region
        $region21: #{tpu_custom_call.1} parent=19 // pred_check
          %p109 = pneg %p34
        $region22: #{tpu_custom_call.1} parent=19 // pred_check_branch
          %111 = sbr.rel (%p109) target = $region24
        $region23: #{tpu_custom_call.1} parent=19 // pred_region
          %s112 = sand.u32 %s24, 1
          %s113 = scalar_lea.sflag [#allocation3], %s112
          %s114 = sand.u32 %s24, 1
          %s115 = smul.addr %s114, 8
          %s116 = scalar_lea.vmem [#allocation2], %s115
          %s118 = ssub.s32 128, 128
          %119 = vsyncadd %s113, %s118
          %s120 = smul.addr %s14, 2
          %s121 = smul.addr %s120, 64
          %s122 = scalar_lea.hbm %s0, %s121
          %s124 = sshll.u32 %s116, 4
          %s125 = int_to_ptr.vmem [resolvable:$true] %s124
          %127 = dma.hbm_to_vmem [thread:$0]  %s122, 128, %s125, %s113
        $region24: #{tpu_custom_call.1} parent=19 // pred_fallthru
          _
      $region20: #{tpu_custom_call.1} parent=5 // pred_fallthru
        _
      %p128 = scmp.le.s32.totalorder 1, %s14
      %p129 = scmp.lt.s32.totalorder %s14, 3
      %p130 = pnand %p128, %p129
      %p131 = pneg %p130
      // Predicated region
      $region25: #{tpu_custom_call.1} parent=5 // pred_check
        _
      $region26: #{tpu_custom_call.1} parent=5 // pred_check_branch
        %133 = sbr.rel (%p130) target = $region28
      $region27: #{tpu_custom_call.1} parent=5 // pred_region
        %s134 = ssub.s32 %s14, 1
        %s135 = sand.u32 %s27, 1
        %s136 = scalar_lea.sflag [#allocation3], %s135
        %s137 = sand.u32 %s27, 1
        %s138 = smul.addr %s137, 8
        %s139 = scalar_lea.vmem [#allocation2], %s138
        // Predicated region
        $region29: #{tpu_custom_call.1} parent=27 // pred_check
          %p140 = pneg %p40
        $region30: #{tpu_custom_call.1} parent=27 // pred_check_branch
          %142 = sbr.rel (%p140) target = $region32
        $region31: #{tpu_custom_call.1} parent=27 // pred_region
          %143 = dma.done %s136, 128
        $region32: #{tpu_custom_call.1} parent=27 // pred_fallthru
          _
        %s144 = sand.u32 %s27, 1
        %s145 = scalar_lea.sflag [#allocation3], %s144
        %s146 = sand.u32 %s27, 1
        %s147 = smul.addr %s146, 8
        %s148 = scalar_lea.vmem [#allocation2], %s147
        %p149 = pneg %p40
        %p150 = pneg %p37
        %p151 = pneg %p61
        %p152 = pneg %p58
        %p153 = pneg %p87
        %p154 = pneg %p84
        %s155 = sand.u32 %s74, 1
        %s156 = scalar_lea.sflag [#allocation4], %s155
        %s157 = sand.u32 %s74, 1
        %s158 = smul.addr %s157, 8
        %s159 = scalar_lea.vmem [#allocation5], %s158
        %v160 = vld [vmem:[%s139] sm:$0xff]
        %v161 = vld [vmem:[%s1] sm:$0xf]
        %s162 = scalar_lea.vmem %s1, 4
        %v163 = vld [vmem:[%s162] sm:$0xf]
        %v165 = vcombine.high %v160, %v160
        %vm167 = vcmask 1043456
        %v168 = vsel %vm167, %v160, 0.0
        %v169 = vrot.slane %v168, 4
        %v170 = vadd.f32 %v168, %v169
        %v171 = vrot.slane %v170, 2
        %v172 = vadd.f32 %v170, %v171
        %v173 = vrot.slane %v172, 1
        %v174 = vadd.f32 %v172, %v173
        %v175 = vsel %vm167, %v165, 0.0
        %v176 = vrot.slane %v175, 4
        %v177 = vadd.f32 %v175, %v176
        %v178 = vrot.slane %v177, 2
        %v179 = vadd.f32 %v177, %v178
        %v180 = vrot.slane %v179, 1
        %v181 = vadd.f32 %v179, %v180
        %v182 = vrcp.pop 4.0
        %v183 = vmul.f32 %v174, %v182
        %v184 = vmul.f32 %v181, %v182
        %v187 = vcombine.low %v183, %v184
        %v189 = vsub.f32 %v160, %v187
        %v190 = vmul.f32 %v189, %v189
        %v192 = vcombine.high %v190, %v190
        %v194 = vsel %vm167, %v190, 0.0
        %v195 = vrot.slane %v194, 4
        %v196 = vadd.f32 %v194, %v195
        %v197 = vrot.slane %v196, 2
        %v198 = vadd.f32 %v196, %v197
        %v199 = vrot.slane %v198, 1
        %v200 = vadd.f32 %v198, %v199
        %v201 = vsel %vm167, %v192, 0.0
        %v202 = vrot.slane %v201, 4
        %v203 = vadd.f32 %v201, %v202
        %v204 = vrot.slane %v203, 2
        %v205 = vadd.f32 %v203, %v204
        %v206 = vrot.slane %v205, 1
        %v207 = vadd.f32 %v205, %v206
        %v208 = vmul.f32 %v200, %v182
        %v209 = vmul.f32 %v207, %v182
        %v210 = vrsqrt.pop %v208
        %v211 = vmul.f32 %v208, %v210
        %vm212 = vcmp.eq.f32.partialorder %v208, inf
        %v213 = vsel %vm212, %v208, %v211
        %vm214 = vcmp.eq.f32.partialorder %v208, 0.0
        %v215 = vand.u32 %v208, 2147483648
        %v216 = vsel %vm214, %v215, %v213
        %v217 = vrsqrt.pop %v209
        %v218 = vmul.f32 %v209, %v217
        %vm219 = vcmp.eq.f32.partialorder %v209, inf
        %v220 = vsel %vm219, %v209, %v218
        %vm221 = vcmp.eq.f32.partialorder %v209, 0.0
        %v222 = vand.u32 %v209, 2147483648
        %v223 = vsel %vm221, %v222, %v220
        %v224 = vadd.f32 %v216, 1e-05
        %v225 = vadd.f32 %v223, 1e-05
        %v226 = vrcp.pop %v224
        %v227 = vmul.f32 1.0, %v226
        %v228 = vrcp.pop %v225
        %v229 = vmul.f32 1.0, %v228
        %v232 = vcombine.low %v227, %v229
        %v234 = vmul.f32 %v189, %v232
        %236 = vset.pattern.permute.xlu0 0
        %237 = vperm.xlu0 %236, %v161
        %v238 = vpop.permute.xlu0 %237
        %v240 = vunpack.c.l.s4 839922192
        %v241 = vunpack.c.0.s8 %v240
        %v242 = vlaneseq
        %v243 = vshrl.u32 %v242, 7
        %v244 = vsub.s32 %v241, %v243
        %v245 = vrot.slane %v238, %v244
        %v247 = vmul.f32 %v234, %v245
        %249 = vset.pattern.permute.xlu0 0
        %250 = vperm.xlu0 %249, %v163
        %v251 = vpop.permute.xlu0 %250
        %v253 = vunpack.c.l.s4 839922192
        %v254 = vunpack.c.0.s8 %v253
        %v255 = vlaneseq
        %v256 = vshrl.u32 %v255, 7
        %v257 = vsub.s32 %v254, %v256
        %v258 = vrot.slane %v251, %v257
        %v260 = vadd.f32 %v247, %v258
        %261 = vst [vmem:[%s159] sm:$0xff] %v260
        %s262 = sand.u32 %s74, 1
        %s263 = scalar_lea.sflag [#allocation4], %s262
        %s264 = sand.u32 %s74, 1
        %s265 = smul.addr %s264, 8
        %s266 = scalar_lea.vmem [#allocation5], %s265
        // Predicated region
        $region33: #{tpu_custom_call.1} parent=27 // pred_check
          %p267 = pneg %p84
        $region34: #{tpu_custom_call.1} parent=27 // pred_check_branch
          %269 = sbr.rel (%p267) target = $region36
        $region35: #{tpu_custom_call.1} parent=27 // pred_region
          %s271 = ssub.s32 128, 128
          %272 = vsyncadd %s263, %s271
          %s273 = smul.addr %s19, 2
          %s274 = smul.addr %s273, 64
          %s275 = scalar_lea.hbm %s2, %s274
          %s277 = sshll.u32 %s266, 4
          %s278 = int_to_ptr.vmem [resolvable:$true] %s277
          %280 = dma.vmem_to_hbm [thread:$0]  %s278, 128, %s275, %s263
        $region36: #{tpu_custom_call.1} parent=27 // pred_fallthru
          _
      $region28: #{tpu_custom_call.1} parent=5 // pred_fallthru
        _
      %p281 = scmp.le.s32.totalorder 2, %s14
      // Predicated region
      $region37: #{tpu_custom_call.1} parent=5 // pred_check
        %p282 = pneg %p281
      $region38: #{tpu_custom_call.1} parent=5 // pred_check_branch
        %284 = sbr.rel (%p282) target = $region40
      $region39: #{tpu_custom_call.1} parent=5 // pred_region
        %s285 = ssub.s32 %s14, 2
        // Predicated region
        $region41: #{tpu_custom_call.1} parent=39 // pred_check
          %p286 = pneg %p90
        $region42: #{tpu_custom_call.1} parent=39 // pred_check_branch
          %288 = sbr.rel (%p286) target = $region44
        $region43: #{tpu_custom_call.1} parent=39 // pred_region
          %s289 = sand.u32 %s75, 1
          %s290 = scalar_lea.sflag [#allocation4], %s289
          %s291 = sand.u32 %s75, 1
          %s292 = smul.addr %s291, 8
          %s293 = scalar_lea.vmem [#allocation5], %s292
          %294 = dma.done %s290, 128
        $region44: #{tpu_custom_call.1} parent=39 // pred_fallthru
          _
      $region40: #{tpu_custom_call.1} parent=5 // pred_fallthru
        _
    $region6: #{tpu_custom_call.1} parent=1 // loop_footer
      %s18 = sadd.s32 1, %s14
    $region7: #{tpu_custom_call.1} parent=1 // loop_footer_branch
      %13 = sbr.rel target = $region3
    $region8: #{tpu_custom_call.1} parent=1 // loop_exit
      _
    %295 = vsyncpa [#allocation3], 1
    %s296 = scalar_lea.sflag [#allocation3], 1
    %297 = vsyncpa %s296, 1
    %298 = vsyncpa [#allocation4], 1
    %s299 = scalar_lea.sflag [#allocation4], 1
    %300 = vsyncpa %s299, 1

</llo_original>
